<compile_context>
chip_gen: v7x
topology: tpu7x:2x2x1
jax: 0.10.0
libtpu: 0.0.40
codegen_flags: <defaults>
</compile_context>

<pallas_src>
import functools

import jax
import jax.numpy as jnp
from jax import lax
from jax.experimental import pallas as pl
from jax.experimental.pallas import tpu as pltpu

_LANES = 128
_TILE_R = 2048  # 2048 x 128 f32 = 1 MiB per block


def _qrange(num_bits):
    qmin = -1.0 * 2.0 ** int(num_bits) / 2.0
    qmax = -qmin - 1.0
    return qmin, qmax


def _tpu_limits():
    """Per-generation limits derived from VMEM capacity (conservative fallback)."""
    try:
        vmem = int(pltpu.get_tpu_info().vmem_capacity_bytes)
    except Exception:
        vmem = 64 << 20  # v7x per-core VMEM; safe everywhere
    # Fused path holds input slab + f32 temporaries + output (~4x native f32 bytes).
    fuse_limit = min(max(vmem // 16, 1 << 20), 8 << 20)   # native bytes
    vmem_limit = min(max(vmem // 2, 32 << 20), 64 << 20)  # scoped VMEM for the fused call
    return fuse_limit, vmem_limit


_FUSE_LIMIT, _VMEM_LIMIT = _tpu_limits()


def _compute_scale(min_val, max_val, num_bits=8):
    """scale / inv_scale exactly as the PyTorch reference formula (plain JAX)."""
    qmin, qmax = _qrange(num_bits)
    cmin = jnp.minimum(jnp.asarray(min_val, jnp.float32), 0.0)
    cmax = jnp.maximum(jnp.asarray(max_val, jnp.float32), 0.0)
    max_range = jnp.maximum(-cmin, cmax)
    scale = jnp.where(
        cmax == cmin,
        jnp.float32(1.0),
        jnp.maximum(max_range / jnp.float32((qmax - qmin) / 2.0), jnp.float32(1e-8)),
    )
    return scale, jnp.float32(1.0) / scale


# ---------------------------------------------------------------------------
# Slab plumbing: flatten to a lane-dense (rows, 128) view, shared by both passes.
# ---------------------------------------------------------------------------
def _to_slab(x):
    flat = x.reshape(-1)
    n = flat.shape[0]
    pad = (-n) % _LANES
    if pad:
        # Edge padding repeats a real element -> global min/max are unchanged.
        flat = jnp.pad(flat, (0, pad), mode="edge")
    return flat.reshape(-1, _LANES), n, bool(pad)


def _from_slab(out2, n, shape, padded):
    if padded:
        return out2.reshape(-1)[:n].reshape(shape)
    return out2.reshape(shape)


# ---------------------------------------------------------------------------
# Kernels
# ---------------------------------------------------------------------------
def _fused_quant_kernel(x_ref, o_ref, min_ref, max_ref, scale_ref, inv_ref, *, qmin, qmax):
    """Whole tensor resident in VMEM: min/max + scale + quantize in one HBM pass."""
    x = x_ref[...].astype(jnp.float32)
    # Reduce rows (sublanes) first -- mostly VPU work -- lanes last (single XLU reduce).
    col_min = jnp.min(x, axis=0, keepdims=True)          # (1, 128)
    col_max = jnp.max(x, axis=0, keepdims=True)
    bmin = jnp.min(col_min, axis=1, keepdims=True)       # (1, 1)
    bmax = jnp.max(col_max, axis=1, keepdims=True)
    min_ref[...] = bmin
    max_ref[...] = bmax
    cmin = jnp.minimum(bmin, 0.0)
    cmax = jnp.maximum(bmax, 0.0)
    max_range = jnp.maximum(-cmin, cmax)
    scale = jnp.where(
        cmax == cmin,
        jnp.float32(1.0),
        jnp.maximum(max_range / jnp.float32((qmax - qmin) / 2.0), jnp.float32(1e-8)),
    )
    inv_scale = jnp.float32(1.0) / scale
    # Export the exact scale bits used, so callers / references can match bit-for-bit.
    scale_ref[...] = scale
    inv_ref[...] = inv_scale
    q = jnp.clip(jnp.round(x * inv_scale), qmin, qmax)
    o_ref[...] = (q * scale).astype(o_ref.dtype)


def _minmax_tiled_kernel(x_ref, min_ref, max_ref, min_acc, max_acc, *, acc_rows, rows_rem):
    """grid = (nblocks,): running min/max in a tiny (acc_rows, 128) VMEM accumulator."""
    t = pl.program_id(0)
    x = x_ref[...].astype(jnp.float32)

    if rows_rem:
        # Last block extends past the slab: mask the block-padding garbage rows.
        rem = jnp.where(t == pl.num_programs(0) - 1, rows_rem, x.shape[0])
        row = lax.broadcasted_iota(jnp.int32, x.shape, 0)
        valid = row < rem
        x_min_in = jnp.where(valid, x, jnp.inf)
        x_max_in = jnp.where(valid, x, -jnp.inf)
    else:
        x_min_in = x
        x_max_in = x

    # Pre-reduce the tile to a vreg-shaped partial (pure VPU tree, no XLU per step).
    pmin = jnp.min(x_min_in.reshape(-1, acc_rows, x.shape[1]), axis=0)
    pmax = jnp.max(x_max_in.reshape(-1, acc_rows, x.shape[1]), axis=0)

    @pl.when(t == 0)
    def _():
        min_acc[...] = pmin
        max_acc[...] = pmax

    @pl.when(t > 0)
    def _():
        min_acc[...] = jnp.minimum(min_acc[...], pmin)
        max_acc[...] = jnp.maximum(max_acc[...], pmax)

    @pl.when(t == pl.num_programs(0) - 1)
    def _():
        min_ref[...] = min_acc[...]
        max_ref[...] = max_acc[...]


def _quantize_kernel(scale_ref, x_ref, o_ref, *, qmin, qmax):
    """Elementwise fake-quantize; scale / inv_scale read once from SMEM."""
    scale = scale_ref[0]
    inv_scale = scale_ref[1]
    x = x_ref[...].astype(jnp.float32)
    q = jnp.clip(jnp.round(x * inv_scale), qmin, qmax)
    o_ref[...] = (q * scale).astype(o_ref.dtype)


# ---------------------------------------------------------------------------
# Slab-level wrappers (tiled two-pass path)
# ---------------------------------------------------------------------------
def _slab_minmax(x2):
    rows = x2.shape[0]
    tile_r = min(rows, _TILE_R)
    nblocks = pl.cdiv(rows, tile_r)
    acc_rows = 8 if tile_r % 8 == 0 else 1
    rows_rem = rows % tile_r  # 0 -> no masking code emitted

    pmin, pmax = pl.pallas_call(
        functools.partial(_minmax_tiled_kernel, acc_rows=acc_rows, rows_rem=rows_rem),
        out_shape=(
            jax.ShapeDtypeStruct((acc_rows, _LANES), jnp.float32),
            jax.ShapeDtypeStruct((acc_rows, _LANES), jnp.float32),
        ),
        grid=(nblocks,),
        in_specs=[pl.BlockSpec((tile_r, _LANES), lambda t: (t, 0))],
        out_specs=(
            pl.BlockSpec((acc_rows, _LANES), lambda t: (0, 0)),
            pl.BlockSpec((acc_rows, _LANES), lambda t: (0, 0)),
        ),
        scratch_shapes=[
            pltpu.VMEM((acc_rows, _LANES), jnp.float32),
            pltpu.VMEM((acc_rows, _LANES), jnp.float32),
        ],
        compiler_params=pltpu.CompilerParams(dimension_semantics=("arbitrary",)),
    )(x2)
    # Tiny (acc_rows, 128) final combine.
    return jnp.min(pmin), jnp.max(pmax)


def _slab_quantize(x2, scale, inv_scale, out_dtype, num_bits):
    qmin, qmax = _qrange(num_bits)
    rows = x2.shape[0]
    tile_r = min(rows, _TILE_R)
    nblocks = pl.cdiv(rows, tile_r)
    scales = jnp.stack(
        [jnp.asarray(scale, jnp.float32).reshape(()),
         jnp.asarray(inv_scale, jnp.float32).reshape(())]
    )  # (2,) -> SMEM
    return pl.pallas_call(
        functools.partial(_quantize_kernel, qmin=qmin, qmax=qmax),
        out_shape=jax.ShapeDtypeStruct((rows, _LANES), out_dtype),
        grid=(nblocks,),
        in_specs=[
            pl.BlockSpec(memory_space=pltpu.MemorySpace.SMEM),
            pl.BlockSpec((tile_r, _LANES), lambda t: (t, 0)),
        ],
        out_specs=pl.BlockSpec((tile_r, _LANES), lambda t: (t, 0)),
        compiler_params=pltpu.CompilerParams(dimension_semantics=("parallel",)),
    )(scales, x2)


# ---------------------------------------------------------------------------
# Public forward paths
# ---------------------------------------------------------------------------
def _fused_forward(x, num_bits):
    qmin, qmax = _qrange(num_bits)
    x2, n, padded = _to_slab(x)
    rows = x2.shape[0]
    out2, bmin, bmax, scale, inv_scale = pl.pallas_call(
        functools.partial(_fused_quant_kernel, qmin=qmin, qmax=qmax),
        out_shape=(
            jax.ShapeDtypeStruct((rows, _LANES), x.dtype),
            jax.ShapeDtypeStruct((1, 1), jnp.float32),
            jax.ShapeDtypeStruct((1, 1), jnp.float32),
            jax.ShapeDtypeStruct((1, 1), jnp.float32),
            jax.ShapeDtypeStruct((1, 1), jnp.float32),
        ),
        compiler_params=pltpu.CompilerParams(vmem_limit_bytes=_VMEM_LIMIT),
    )(x2)
    out = _from_slab(out2, n, x.shape, padded)
    return out, bmin[0, 0], bmax[0, 0], scale[0, 0], inv_scale[0, 0]


def quant_forward(x, num_bits=8, *, fuse_limit_bytes=None):
    """Pallas equivalent of Quant().forward(x) with fresh state (min_val == max_val).

    Returns (out, batch_min, batch_max, scale, inv_scale)."""
    limit = _FUSE_LIMIT if fuse_limit_bytes is None else fuse_limit_bytes
    if x.size * x.dtype.itemsize <= limit:
        return _fused_forward(x, num_bits)
    # Two-pass path: shared slab, tiled min/max, plain-JAX scale, tiled quantize.
    x2, n, padded = _to_slab(x)
    bmin, bmax = _slab_minmax(x2)
    scale, inv_scale = _compute_scale(bmin, bmax, num_bits)
    out2 = _slab_quantize(x2, scale, inv_scale, x.dtype, num_bits)
    return _from_slab(out2, n, x.shape, padded), bmin, bmax, scale, inv_scale


class QuantPallas:
    """Stateful wrapper mirroring the PyTorch Quant module (momentum range tracking)."""

    def __init__(self, num_bits=8, momentum=0.0078):
        self.min_val = jnp.float32(0.0)
        self.max_val = jnp.float32(0.0)
        self.momentum = momentum
        self.num_bits = num_bits
        self.last_scale = None
        self.last_inv_scale = None
        # PyTorch re-checks `min_val == max_val` each call; an explicit flag keeps the
        # running stats on-device (no host sync).
        # TODO(synk): differs from torch only if the first batch is constant (min == max).
        self._initialized = False

    def __call__(self, x):
        if not self._initialized:
            out, bmin, bmax, scale, inv_scale = quant_forward(x, self.num_bits)
            self.min_val, self.max_val = bmin, bmax
            self.last_scale, self.last_inv_scale = scale, inv_scale
            self._initialized = True
            return out
        # EMA branch: one stats pass + one quantize pass over a single shared slab.
        x2, n, padded = _to_slab(x)
        bmin, bmax = _slab_minmax(x2)
        self.min_val = self.min_val + self.momentum * (bmin - self.min_val)
        self.max_val = self.max_val + self.momentum * (bmax - self.max_val)
        scale, inv_scale = _compute_scale(self.min_val, self.max_val, self.num_bits)
        self.last_scale, self.last_inv_scale = scale, inv_scale
        out2 = _slab_quantize(x2, scale, inv_scale, x.dtype, self.num_bits)
        return _from_slab(out2, n, x.shape, padded)


# ---------------------------------------------------------------------------
# References / checks
# ---------------------------------------------------------------------------
def _reference_quantize_with(x, scale, inv_scale, num_bits=8):
    """clip(round(x * inv_scale)) * scale, using the exact scale bits the kernel used."""
    qmin, qmax = _qrange(num_bits)
    xf = x.astype(jnp.float32)
    return (jnp.clip(jnp.round(xf * inv_scale), qmin, qmax) * scale).astype(x.dtype)


def _assert_quant_equal(out, ref, scale, max_flip_frac=5e-3):
    """Outputs must match exactly, except (rare) rounding ties may flip by one step."""
    step = jnp.asarray(scale, jnp.float32)
    diff = jnp.abs(out.astype(jnp.float32) - ref.astype(jnp.float32))
    same = diff <= 1e-6 * step
    one_step = jnp.abs(diff - step) <= 1e-4 * step
    assert bool(jnp.all(same | one_step)), "quantized output mismatch"
    frac = float(jnp.mean(jnp.where(same, 0.0, 1.0)))
    assert frac <= max_flip_frac, f"too many rounding flips: {frac}"


if __name__ == "__main__":
    tol = dict(atol=1e-6, rtol=1e-6)

    # 1) Fresh-state forward on an NCHW activation (fused single-pass path).
    x = jax.random.normal(jax.random.PRNGKey(0), (2, 4, 16, 16), jnp.float32) * 3.0
    module = QuantPallas(num_bits=8, momentum=0.0078)
    out = jax.block_until_ready(module(x))
    assert out.shape == x.shape and out.dtype == x.dtype
    rmin, rmax = jnp.min(x), jnp.max(x)
    assert jnp.allclose(module.min_val, rmin, **tol)
    assert jnp.allclose(module.max_val, rmax, **tol)
    ref_scale, _ = _compute_scale(rmin, rmax, 8)
    assert jnp.allclose(module.last_scale, ref_scale, rtol=1e-5, atol=0.0)
    ref = _reference_quantize_with(x, module.last_scale, module.last_inv_scale, 8)
    _assert_quant_equal(out, ref, module.last_scale)

    # 2) Two-pass tiled path (forced), rows divisible by the tile (no mask variant).
    xb = jax.random.normal(jax.random.PRNGKey(3), (4, 8, 64, 256), jnp.float32) * 4.0
    outb, bmin, bmax, scale_b, inv_b = quant_forward(xb, 8, fuse_limit_bytes=0)
    outb = jax.block_until_ready(outb)
    assert jnp.allclose(bmin, jnp.min(xb), **tol)
    assert jnp.allclose(bmax, jnp.max(xb), **tol)
    _assert_quant_equal(outb, _reference_quantize_with(xb, scale_b, inv_b, 8), scale_b)

    # 2b) Two-pass path with a ragged trailing block (exercises the in-kernel row mask
    #     and Pallas boundary-block handling; no whole-tensor padding copy).
    xm = jax.random.normal(jax.random.PRNGKey(4), (2 * _TILE_R + 40, _LANES), jnp.float32) * 2.0
    outm, mmin, mmax, scale_m, inv_m = quant_forward(xm, 8, fuse_limit_bytes=0)
    outm = jax.block_until_ready(outm)
    assert jnp.allclose(mmin, jnp.min(xm), **tol)
    assert jnp.allclose(mmax, jnp.max(xm), **tol)
    _assert_quant_equal(outm, _reference_quantize_with(xm, scale_m, inv_m, 8), scale_m)

    # 3) Ragged element count (edge-padded lane-dense slab + slice-back, fused path).
    xr = jax.random.normal(jax.random.PRNGKey(2), (3, 5, 7, 11), jnp.float32) * 1.5
    outr, pmn, pmx, scale_r, inv_r = quant_forward(xr, 8)
    outr = jax.block_until_ready(outr)
    assert outr.shape == xr.shape and outr.dtype == xr.dtype
    assert jnp.allclose(pmn, jnp.min(xr), **tol)
    assert jnp.allclose(pmx, jnp.max(xr), **tol)
    _assert_quant_equal(outr, _reference_quantize_with(xr, scale_r, inv_r, 8), scale_r)

    # 4) Second call on the module: running-stat (EMA) branch (stats + quantize passes).
    xe = jax.random.normal(jax.random.PRNGKey(1), (2, 4, 16, 16), jnp.float32) * 2.0
    prev_min, prev_max = module.min_val, module.max_val
    oute = jax.block_until_ready(module(xe))
    ema_min = prev_min + 0.0078 * (jnp.min(xe) - prev_min)
    ema_max = prev_max + 0.0078 * (jnp.max(xe) - prev_max)
    assert jnp.allclose(module.min_val, ema_min, **tol)
    assert jnp.allclose(module.max_val, ema_max, **tol)
    es, _ = _compute_scale(ema_min, ema_max, 8)
    assert jnp.allclose(module.last_scale, es, rtol=1e-5, atol=0.0)
    refe = _reference_quantize_with(xe, module.last_scale, module.last_inv_scale, 8)
    _assert_quant_equal(oute, refe, module.last_scale)

    print("KERNEL_OK")
</pallas_src>

<mosaic_0001>
module attributes {stable_mosaic.version = 11 : i64} {
  func.func @_fused_quant_kernel(%arg0: memref<16x128xf32, #tpu.memory_space<vmem>>, %arg1: memref<16x128xf32, #tpu.memory_space<vmem>>, %arg2: memref<1x1xf32, #tpu.memory_space<vmem>>, %arg3: memref<1x1xf32, #tpu.memory_space<vmem>>, %arg4: memref<1x1xf32, #tpu.memory_space<vmem>>, %arg5: memref<1x1xf32, #tpu.memory_space<vmem>>) attributes {dimension_semantics = [], scalar_prefetch = 0 : i64, scratch_operands = 0 : i64, tpu.core_type = #tpu.core_type<tc>} {
    %c0 = arith.constant 0 : index
    %c0_0 = arith.constant 0 : index
    %0 = vector.load %arg0[%c0, %c0_0] : memref<16x128xf32, #tpu.memory_space<vmem>>, vector<16x128xf32>
    %cst = arith.constant dense<0x7F800000> : vector<128xf32>
    %1 = vector.multi_reduction <minimumf>, %0, %cst [0] : vector<16x128xf32> to vector<128xf32>
    %2 = vector.shape_cast %1 : vector<128xf32> to vector<1x128xf32>
    %cst_1 = arith.constant dense<0xFF800000> : vector<128xf32>
    %3 = vector.multi_reduction <maximumf>, %0, %cst_1 [0] : vector<16x128xf32> to vector<128xf32>
    %4 = vector.shape_cast %3 : vector<128xf32> to vector<1x128xf32>
    %cst_2 = arith.constant dense<0x7F800000> : vector<1xf32>
    %5 = vector.multi_reduction <minimumf>, %2, %cst_2 [1] : vector<1x128xf32> to vector<1xf32>
    %6 = vector.shape_cast %5 : vector<1xf32> to vector<1x1xf32>
    %cst_3 = arith.constant dense<0xFF800000> : vector<1xf32>
    %7 = vector.multi_reduction <maximumf>, %4, %cst_3 [1] : vector<1x128xf32> to vector<1xf32>
    %8 = vector.shape_cast %7 : vector<1xf32> to vector<1x1xf32>
    %c0_4 = arith.constant 0 : index
    %c0_5 = arith.constant 0 : index
    %9 = vector.load %arg2[%c0_4, %c0_5] : memref<1x1xf32, #tpu.memory_space<vmem>>, vector<1x1xf32>
    tpu.vector_store %arg2[%c0_4, %c0_5], %6 {strides = array<i32>} : memref<1x1xf32, #tpu.memory_space<vmem>>, vector<1x1xf32>,
    %c0_6 = arith.constant 0 : index
    %c0_7 = arith.constant 0 : index
    %10 = vector.load %arg3[%c0_6, %c0_7] : memref<1x1xf32, #tpu.memory_space<vmem>>, vector<1x1xf32>
    tpu.vector_store %arg3[%c0_6, %c0_7], %8 {strides = array<i32>} : memref<1x1xf32, #tpu.memory_space<vmem>>, vector<1x1xf32>,
    %cst_8 = arith.constant 0.000000e+00 : f32
    %11 = vector.broadcast %cst_8 : f32 to vector<1x1xf32>
    %12 = arith.minimumf %6, %11 : vector<1x1xf32>
    %cst_9 = arith.constant 0.000000e+00 : f32
    %13 = vector.broadcast %cst_9 : f32 to vector<1x1xf32>
    %14 = arith.maximumf %8, %13 : vector<1x1xf32>
    %cst_10 = arith.constant 0.000000e+00 : f32
    %15 = vector.broadcast %cst_10 : f32 to vector<1x1xf32>
    %16 = arith.subf %15, %12 : vector<1x1xf32>
    %17 = arith.maximumf %16, %14 : vector<1x1xf32>
    %18 = arith.cmpf oeq, %14, %12 : vector<1x1xf32>
    %cst_11 = arith.constant 1.275000e+02 : f32
    %19 = vector.broadcast %cst_11 : f32 to vector<1x1xf32>
    %20 = arith.divf %17, %19 : vector<1x1xf32>
    %cst_12 = arith.constant 9.99999993E-9 : f32
    %21 = vector.broadcast %cst_12 : f32 to vector<1x1xf32>
    %22 = arith.maximumf %20, %21 : vector<1x1xf32>
    %cst_13 = arith.constant 1.000000e+00 : f32
    %23 = vector.broadcast %cst_13 : f32 to vector<1x1xf32>
    %24 = arith.select %18, %23, %22 : vector<1x1xi1>, vector<1x1xf32>
    %cst_14 = arith.constant 1.000000e+00 : f32
    %25 = vector.broadcast %cst_14 : f32 to vector<1x1xf32>
    %26 = arith.divf %25, %24 : vector<1x1xf32>
    %c0_15 = arith.constant 0 : index
    %c0_16 = arith.constant 0 : index
    %27 = vector.load %arg4[%c0_15, %c0_16] : memref<1x1xf32, #tpu.memory_space<vmem>>, vector<1x1xf32>
    tpu.vector_store %arg4[%c0_15, %c0_16], %24 {strides = array<i32>} : memref<1x1xf32, #tpu.memory_space<vmem>>, vector<1x1xf32>,
    %c0_17 = arith.constant 0 : index
    %c0_18 = arith.constant 0 : index
    %28 = vector.load %arg5[%c0_17, %c0_18] : memref<1x1xf32, #tpu.memory_space<vmem>>, vector<1x1xf32>
    tpu.vector_store %arg5[%c0_17, %c0_18], %26 {strides = array<i32>} : memref<1x1xf32, #tpu.memory_space<vmem>>, vector<1x1xf32>,
    %29 = vector.broadcast %26 : vector<1x1xf32> to vector<16x128xf32>
    %30 = arith.mulf %0, %29 : vector<16x128xf32>
    %31 = math.roundeven %30 : vector<16x128xf32>
    %cst_19 = arith.constant -1.280000e+02 : f32
    %cst_20 = arith.constant 1.270000e+02 : f32
    %32 = vector.broadcast %cst_19 : f32 to vector<16x128xf32>
    %33 = arith.maximumf %32, %31 : vector<16x128xf32>
    %34 = vector.broadcast %cst_20 : f32 to vector<16x128xf32>
    %35 = arith.minimumf %34, %33 : vector<16x128xf32>
    %36 = vector.broadcast %24 : vector<1x1xf32> to vector<16x128xf32>
    %37 = arith.mulf %35, %36 : vector<16x128xf32>
    %c0_21 = arith.constant 0 : index
    %c0_22 = arith.constant 0 : index
    %38 = vector.load %arg1[%c0_21, %c0_22] : memref<16x128xf32, #tpu.memory_space<vmem>>, vector<16x128xf32>
    tpu.vector_store %arg1[%c0_21, %c0_22], %37 {strides = array<i32>} : memref<16x128xf32, #tpu.memory_space<vmem>>, vector<16x128xf32>,
    return
  }
}

</mosaic_0001>

<llo_original>
// kernel: tpu_custom_call.1
$region0: #{tpu_custom_call.1}
  #allocation0 [shape = 'u32[]', space=smem, size = 0x4, offset = 0x4, fixed_abs, tag = 'smem constant byte address 0x4 - core index']
  #allocation1 [shape = 'u32[144,128]{1,0:T(1,128)}', space=vmem, size = 0x12000, scoped, tag = 'internal scratch']
  %s0 = inlined_call_operand.hbm [shape: f32[16,128], index: 0, kind: input, shape index: {}]
  %s1 = inlined_call_operand.hbm [shape: f32[16,128], index: 1, kind: output, shape index: {0}]
  %s2 = inlined_call_operand.hbm [shape: f32[1,1], index: 2, kind: output, shape index: {1}]
  %s3 = inlined_call_operand.hbm [shape: f32[1,1], index: 3, kind: output, shape index: {2}]
  %s4 = inlined_call_operand.hbm [shape: f32[1,1], index: 4, kind: output, shape index: {3}]
  %s5 = inlined_call_operand.hbm [shape: f32[1,1], index: 5, kind: output, shape index: {4}]
  %6 = xla_tuple %s1, %s2, %s3, %s4, %s5
  %s7 = sld [smem:[#allocation0]]
  $region50: #{tpu_custom_call.1} parent=0
    _
  %s9 = ssub.s32 1, %s7
  %s10 = scalar_select 0, %s9, %s7
  $region1: #{tpu_custom_call.1} parent=0
    #allocation2 [shape = 'u8[8192]{0}', space=vmem, size = 0x2000, scoped, tag = 'input window, operand 0, single buffered']
    #allocation3 [shape = 's32[1]{0}', space=sflag, size = 0x4, scoped, tag = 'scoped memory for tpu_custom_call.1']
    #allocation4 [shape = 's32[1]{0}', space=sflag, size = 0x4, scoped, tag = 'scoped memory for tpu_custom_call.1']
    #allocation5 [shape = 'u8[8192]{0}', space=vmem, size = 0x2000, scoped, tag = 'output window, operand 0, single buffered']
    #allocation6 [shape = 'u8[512]{0}', space=vmem, size = 0x400, scoped, tag = 'output window, operand 1, single buffered']
    #allocation7 [shape = 's32[1]{0}', space=sflag, size = 0x4, scoped, tag = 'scoped memory for tpu_custom_call.1']
    #allocation8 [shape = 'u8[512]{0}', space=vmem, size = 0x400, scoped, tag = 'output window, operand 2, single buffered']
    #allocation9 [shape = 'u8[512]{0}', space=vmem, size = 0x400, scoped, tag = 'output window, operand 3, single buffered']
    #allocation10 [shape = 's32[1]{0}', space=sflag, size = 0x4, scoped, tag = 'scoped memory for tpu_custom_call.1']
    #allocation11 [shape = 'u8[512]{0}', space=vmem, size = 0x400, scoped, tag = 'output window, operand 4, single buffered']
    %11 = vsyncpa [#allocation3], 0
    %12 = vsyncpa [#allocation4], 0
    %13 = vsyncpa [#allocation7], 0
    %14 = vsyncpa [#allocation10], 0
    // Predicated region
    $region2: #{tpu_custom_call.1} parent=1 // pred_check
      _
    $region3: #{tpu_custom_call.1} parent=1 // pred_check_branch
      %16 = sbr.rel (0) target = $region5
    $region4: #{tpu_custom_call.1} parent=1 // pred_region
      %s18 = ssub.s32 256, 256
      %19 = vsyncadd [#allocation3], %s18
      %s20 = sshll.u32 [#allocation2], 4
      %s21 = int_to_ptr.vmem [resolvable:$true] %s20
      %26 = dma.hbm_to_vmem [thread:$0]  %s0, 256, %s21, [#allocation3], 128, 128, 8
    $region5: #{tpu_custom_call.1} parent=1 // pred_fallthru
      _
    // Predicated region
    $region6: #{tpu_custom_call.1} parent=1 // pred_check
      _
    $region7: #{tpu_custom_call.1} parent=1 // pred_check_branch
      %28 = sbr.rel (0) target = $region9
    $region8: #{tpu_custom_call.1} parent=1 // pred_region
      %29 = dma.done [#allocation3], 256
    $region9: #{tpu_custom_call.1} parent=1 // pred_fallthru
      _
    %v30 = vld [vmem:[#allocation2] sm:$0xff]
    %v31 = vld [vmem:[#allocation2 + $0x8] sm:$0xff]
    %v32 = vmin.f32 %v30, %v31
    %v33 = vrot.slane %v32, 4
    %v34 = vmin.f32 %v32, %v33
    %v35 = vrot.slane %v34, 2
    %v36 = vmin.f32 %v34, %v35
    %v37 = vrot.slane %v36, 1
    %v38 = vmin.f32 %v36, %v37
    %v39 = vmax.f32 %v30, %v31
    %v40 = vrot.slane %v39, 4
    %v41 = vmax.f32 %v39, %v40
    %v42 = vrot.slane %v41, 2
    %v43 = vmax.f32 %v41, %v42
    %v44 = vrot.slane %v43, 1
    %v45 = vmax.f32 %v43, %v44
    %46 = vmin.xlane.f32.xlu0 %v38
    %v47 = vpop.xlane.xlu0 %46
    %48 = vmax.xlane.f32.xlu0 %v45
    %v49 = vpop.xlane.xlu0 %48
    %vm50 = vcmask 0
    %51 = vst.msk [vmem:[#allocation6] sm:$0x1] %vm50, %v47
    %52 = vst.msk [vmem:[#allocation8] sm:$0x1] %vm50, %v49
    %v53 = vmin.f32 %v47, 0.0
    %v54 = vmax.f32 %v49, 0.0
    %v55 = vsub.f32 0.0, %v53
    %v56 = vmax.f32 %v55, %v54
    %vm57 = vcmp.eq.f32.partialorder %v54, %v53
    %v58 = vrcp.pop 127.5
    %v59 = vmul.f32 %v56, %v58
    %v60 = vmax.f32 %v59, 1e-08
    %v61 = vsel %vm57, 1.0, %v60
    %v62 = vrcp.pop %v61
    %v63 = vmul.f32 1.0, %v62
    %64 = vst.msk [vmem:[#allocation9] sm:$0x1] %vm50, %v61
    %65 = vst.msk [vmem:[#allocation11] sm:$0x1] %vm50, %v63
    %v66 = vmul.f32 %v30, %v63
    %v67 = vmul.f32 %v31, %v63
    %v68 = vround.ne.pseudo %v66
    %v69 = vround.ne.pseudo %v67
    %v70 = vmax.f32 %v68, -128.0
    %v71 = vmax.f32 %v69, -128.0
    %v72 = vmin.f32 %v70, 127.0
    %v73 = vmin.f32 %v71, 127.0
    %v74 = vmul.f32 %v72, %v61
    %v75 = vmul.f32 %v73, %v61
    %76 = vst [vmem:[#allocation5] sm:$0xff] %v74
    %77 = vst [vmem:[#allocation5 + $0x8] sm:$0xff] %v75
    // Predicated region
    $region10: #{tpu_custom_call.1} parent=1 // pred_check
      _
    $region11: #{tpu_custom_call.1} parent=1 // pred_check_branch
      %79 = sbr.rel (0) target = $region13
    $region12: #{tpu_custom_call.1} parent=1 // pred_region
      %s81 = ssub.s32 256, 256
      %82 = vsyncadd [#allocation4], %s81
      %s83 = sshll.u32 [#allocation5], 4
      %s84 = int_to_ptr.vmem [resolvable:$true] %s83
      %89 = dma.vmem_to_hbm [thread:$0]  %s84, 256, %s1, [#allocation4], 128, 128, 8
    $region13: #{tpu_custom_call.1} parent=1 // pred_fallthru
      _
    // Predicated region
    $region14: #{tpu_custom_call.1} parent=1 // pred_check
      _
    $region15: #{tpu_custom_call.1} parent=1 // pred_check_branch
      %91 = sbr.rel (0) target = $region17
    $region16: #{tpu_custom_call.1} parent=1 // pred_region
      %s93 = ssub.s32 16, 16
      %94 = vsyncadd [#allocation7], %s93
      %s96 = sshll.u32 [#allocation6], 4
      %s97 = int_to_ptr.vmem [resolvable:$true] %s96
      %99 = dma.vmem_to_hbm [thread:$0]  %s97, 16, %s2, [#allocation7]
    $region17: #{tpu_custom_call.1} parent=1 // pred_fallthru
      _
    // Predicated region
    $region18: #{tpu_custom_call.1} parent=1 // pred_check
      _
    $region19: #{tpu_custom_call.1} parent=1 // pred_check_branch
      %101 = sbr.rel (0) target = $region21
    $region20: #{tpu_custom_call.1} parent=1 // pred_region
      %s103 = ssub.s32 16, 16
      %104 = vsyncadd [#allocation7], %s103
      %s106 = sshll.u32 [#allocation8], 4
      %s107 = int_to_ptr.vmem [resolvable:$true] %s106
      %109 = dma.vmem_to_hbm [thread:$0]  %s107, 16, %s3, [#allocation7]
    $region21: #{tpu_custom_call.1} parent=1 // pred_fallthru
      _
    // Predicated region
    $region22: #{tpu_custom_call.1} parent=1 // pred_check
      _
    $region23: #{tpu_custom_call.1} parent=1 // pred_check_branch
      %111 = sbr.rel (0) target = $region25
    $region24: #{tpu_custom_call.1} parent=1 // pred_region
      %s113 = ssub.s32 16, 16
      %114 = vsyncadd [#allocation10], %s113
      %s116 = sshll.u32 [#allocation9], 4
      %s117 = int_to_ptr.vmem [resolvable:$true] %s116
      %119 = dma.vmem_to_hbm [thread:$0]  %s117, 16, %s4, [#allocation10]
    $region25: #{tpu_custom_call.1} parent=1 // pred_fallthru
      _
    // Predicated region
    $region26: #{tpu_custom_call.1} parent=1 // pred_check
      _
    $region27: #{tpu_custom_call.1} parent=1 // pred_check_branch
      %121 = sbr.rel (0) target = $region29
    $region28: #{tpu_custom_call.1} parent=1 // pred_region
      %s123 = ssub.s32 16, 16
      %124 = vsyncadd [#allocation10], %s123
      %s126 = sshll.u32 [#allocation11], 4
      %s127 = int_to_ptr.vmem [resolvable:$true] %s126
      %129 = dma.vmem_to_hbm [thread:$0]  %s127, 16, %s5, [#allocation10]
    $region29: #{tpu_custom_call.1} parent=1 // pred_fallthru
      _
    // Predicated region
    $region30: #{tpu_custom_call.1} parent=1 // pred_check
      _
    $region31: #{tpu_custom_call.1} parent=1 // pred_check_branch
      %131 = sbr.rel (0) target = $region33
    $region32: #{tpu_custom_call.1} parent=1 // pred_region
      %132 = dma.done [#allocation4], 256
    $region33: #{tpu_custom_call.1} parent=1 // pred_fallthru
      _
    // Predicated region
    $region34: #{tpu_custom_call.1} parent=1 // pred_check
      _
    $region35: #{tpu_custom_call.1} parent=1 // pred_check_branch
      %134 = sbr.rel (0) target = $region37
    $region36: #{tpu_custom_call.1} parent=1 // pred_region
      %135 = dma.done [#allocation7], 16
    $region37: #{tpu_custom_call.1} parent=1 // pred_fallthru
      _
    // Predicated region
    $region38: #{tpu_custom_call.1} parent=1 // pred_check
      _
    $region39: #{tpu_custom_call.1} parent=1 // pred_check_branch
      %137 = sbr.rel (0) target = $region41
    $region40: #{tpu_custom_call.1} parent=1 // pred_region
      %138 = dma.done [#allocation7], 16
    $region41: #{tpu_custom_call.1} parent=1 // pred_fallthru
      _
    // Predicated region
    $region42: #{tpu_custom_call.1} parent=1 // pred_check
      _
    $region43: #{tpu_custom_call.1} parent=1 // pred_check_branch
      %140 = sbr.rel (0) target = $region45
    $region44: #{tpu_custom_call.1} parent=1 // pred_region
      %141 = dma.done [#allocation10], 16
    $region45: #{tpu_custom_call.1} parent=1 // pred_fallthru
      _
    // Predicated region
    $region46: #{tpu_custom_call.1} parent=1 // pred_check
      _
    $region47: #{tpu_custom_call.1} parent=1 // pred_check_branch
      %143 = sbr.rel (0) target = $region49
    $region48: #{tpu_custom_call.1} parent=1 // pred_region
      %144 = dma.done [#allocation10], 16
    $region49: #{tpu_custom_call.1} parent=1 // pred_fallthru
      _
    %145 = vsyncpa [#allocation3], 1
    %146 = vsyncpa [#allocation4], 1
    %147 = vsyncpa [#allocation7], 1
    %148 = vsyncpa [#allocation10], 1

</llo_original>
